<compile_context>
chip_gen: v7x
topology: tpu7x:2x2x1
jax: 0.10.0
libtpu: 0.0.40
codegen_flags: <defaults>
</compile_context>

<pallas_src>
import functools

import jax
import jax.numpy as jnp
from jax import lax
from jax.experimental import pallas as pl
from jax.experimental.pallas import tpu as pltpu

_LANE = 128
_SUBLANE = 8
_MAX_FEATURE_TILE = 2048
_MAX_BATCH_TILE = 1024


# --------------------------------------------------------------------------
# Hardware-aware sizing helpers
# --------------------------------------------------------------------------
def _tpu_vmem_capacity_bytes():
    try:
        cap = int(pltpu.get_tpu_info().vmem_capacity_bytes)
        if cap > 0:
            return cap
    except Exception:
        pass
    return 64 * 1024 * 1024          # conservative (v7x per-TensorCore VMEM)


def _vmem_limit(block_bytes, ceiling):
    est = int(block_bytes) + 8 * 1024 * 1024
    return int(min(ceiling, max(16 * 1024 * 1024, est)))


def _pick_batch_tile(n_rows, per_row_bytes, budget, override=None):
    if override is not None:
        bt = max(_SUBLANE, (int(override) // _SUBLANE) * _SUBLANE)
    else:
        bt = max(_SUBLANE, (budget // max(per_row_bytes, 1) // _SUBLANE) * _SUBLANE)
        bt = min(bt, _MAX_BATCH_TILE)
    return n_rows if bt >= n_rows else bt


# --------------------------------------------------------------------------
# In-kernel helpers
# --------------------------------------------------------------------------
def _fold_reduce(t, fold, f_per_fold):
    """Sum a (1, 128) row over its `fold` batch-fold slots with a log2 roll tree.

    Leaves the per-feature totals replicated in every fold slot (cheap XLU work,
    2*log2(fold) rolls instead of 2*(fold-1))."""
    d = f_per_fold
    total = fold * f_per_fold
    while d < total:
        t = t + pltpu.roll(t, d, axis=1)
        d *= 2
    return t


def _chan_update(batch_mean, batch_var, old_mean, old_var, c_old, n_batch):
    """Chan et al. (1979) pairwise running-moment update (matches the PyTorch module)."""
    c_b = jnp.float32(n_batch)
    tot = c_old + c_b
    delta = batch_mean - old_mean
    new_mean = old_mean + delta * (c_b / tot)
    new_var = (old_var * c_old + batch_var * c_b
               + delta * delta * (c_old * c_b / tot)) / tot
    return new_mean, new_var


# --------------------------------------------------------------------------
# Kernels
# --------------------------------------------------------------------------
def _train_kernel(count_ref, x_ref, mean_ref, var_ref,
                  y_ref, new_mean_ref, new_var_ref,
                  *, eps: float, n_batch: int, fold: int, f_per_fold: int):
    """Fused single-pass: centered batch stats + running update + normalize."""
    x = x_ref[...].astype(jnp.float32)                       # (rows, ft)
    s1 = jnp.sum(x, axis=0, keepdims=True)                   # (1, ft)
    if fold > 1:
        s1 = _fold_reduce(s1, fold, f_per_fold)
    inv_n = jnp.float32(1.0 / n_batch)
    batch_mean = s1 * inv_n                                   # replicated per fold slot

    xc = x - batch_mean                                       # centered (no cancellation)
    s2 = jnp.sum(xc * xc, axis=0, keepdims=True)
    if fold > 1:
        s2 = _fold_reduce(s2, fold, f_per_fold)
    batch_var = s2 * inv_n                                    # unbiased=False

    # NOTE: count is carried as f32 inside the kernel; exactness is lost past
    # ~2^24 accumulated samples (matches float running-stat precision anyway).
    c_old = count_ref[0].astype(jnp.float32)
    new_mean, new_var = _chan_update(batch_mean, batch_var,
                                     mean_ref[...], var_ref[...], c_old, n_batch)
    new_mean_ref[...] = new_mean
    new_var_ref[...] = new_var

    # Normalize with the UPDATED statistics.  Re-read x_ref (VMEM loads are
    # nearly free) instead of keeping the f32 upcast live across the stats.
    scale = lax.rsqrt(new_var + jnp.float32(eps))
    shift = -new_mean * scale
    y_ref[...] = (x_ref[...].astype(jnp.float32) * scale + shift).astype(y_ref.dtype)


def _stats_kernel(count_ref, x_ref, mean_ref, var_ref,
                  new_mean_ref, new_var_ref, s1_ref, s2_ref,
                  *, n_batch: int, n_rows: int, bt_rows: int,
                  fold: int, f_per_fold: int):
    """Pass 1 of the batch-tiled training path: streaming s1/s2 + running update."""
    i = pl.program_id(1)

    @pl.when(i == 0)
    def _():
        s1_ref[...] = jnp.zeros_like(s1_ref)
        s2_ref[...] = jnp.zeros_like(s2_ref)

    x = x_ref[...].astype(jnp.float32)                        # (bt, ft)
    if n_rows % bt_rows != 0:
        # Mask the ragged rows of the last batch tile (OOB loads are undefined).
        row = lax.broadcasted_iota(jnp.int32, x.shape, 0) + i * bt_rows
        x = jnp.where(row < n_rows, x, jnp.float32(0.0))
    s1_ref[...] += jnp.sum(x, axis=0, keepdims=True)
    s2_ref[...] += jnp.sum(x * x, axis=0, keepdims=True)

    @pl.when(i == pl.num_programs(1) - 1)
    def _():
        s1 = s1_ref[...]
        s2 = s2_ref[...]
        if fold > 1:
            s1 = _fold_reduce(s1, fold, f_per_fold)
            s2 = _fold_reduce(s2, fold, f_per_fold)
        inv_n = jnp.float32(1.0 / n_batch)
        batch_mean = s1 * inv_n
        batch_var = jnp.maximum(s2 * inv_n - batch_mean * batch_mean,
                                jnp.float32(0.0))
        c_old = count_ref[0].astype(jnp.float32)
        new_mean, new_var = _chan_update(batch_mean, batch_var,
                                         mean_ref[...], var_ref[...], c_old, n_batch)
        new_mean_ref[...] = new_mean
        new_var_ref[...] = new_var


def _norm_kernel(x_ref, scale_ref, shift_ref, y_ref):
    """Elementwise normalize with precomputed scale/shift: y = x*scale + shift."""
    y_ref[...] = (x_ref[...].astype(jnp.float32) * scale_ref[...]
                  + shift_ref[...]).astype(y_ref.dtype)


# --------------------------------------------------------------------------
# Wrapper
# --------------------------------------------------------------------------
def _normalize_call(x2, scale_row, shift_row, ft, bn, vmem_limit, out_dtype):
    n2, w = x2.shape
    grid = (pl.cdiv(w, ft), pl.cdiv(n2, bn))   # feature outer, batch inner:
    return pl.pallas_call(                      # scale/shift blocks are revisited
        _norm_kernel,
        grid=grid,
        in_specs=[
            pl.BlockSpec((bn, ft), lambda j, i: (i, j)),
            pl.BlockSpec((1, ft), lambda j, i: (0, j)),
            pl.BlockSpec((1, ft), lambda j, i: (0, j)),
        ],
        out_specs=pl.BlockSpec((bn, ft), lambda j, i: (i, j)),
        out_shape=jax.ShapeDtypeStruct((n2, w), out_dtype),
        compiler_params=pltpu.CompilerParams(
            dimension_semantics=("parallel", "parallel"),
            vmem_limit_bytes=vmem_limit,
        ),
    )(x2, scale_row, shift_row)


def running_norm_forward(x, running_mean, running_var, count,
                         *, eps: float = 1e-5, training: bool = True,
                         feature_tile: int | None = None,
                         batch_tile: int | None = None,
                         force_two_pass: bool = False):
    """Pallas implementation of RunningNorm.forward.

    training=True : returns (y, new_running_mean, new_running_var, new_count)
    training=False: returns y
    """
    n, f = x.shape
    isz = jnp.dtype(x.dtype).itemsize

    cap = _tpu_vmem_capacity_bytes()
    budget = int(cap * 0.65)
    ceiling = int(cap * 0.85)
    num_tc = 2 if cap <= 64 * 1024 * 1024 else 1   # v7x-style chips: 2 TCs, 64 MiB each

    # ---- lane-dense layout selection (no HBM pad / slice of x, ever) -------
    fold = 1
    if f < _LANE and _LANE % f == 0 and n % (_LANE // f) == 0:
        fold = _LANE // f                     # fold batch rows into lanes (free reshape)
    n2 = n // fold
    w_row = f * fold
    x2 = x.reshape(n2, w_row) if fold > 1 else x

    if fold > 1:
        ft = _LANE
    elif f % _LANE != 0:
        ft = f                                 # ragged F: whole feature axis is one block
    elif feature_tile is not None:
        ft = min(f, max(_LANE, (int(feature_tile) // _LANE) * _LANE))
    else:
        ft = min(f, _MAX_FEATURE_TILE)
        if num_tc >= 2 and f >= 2 * _LANE:
            ft = min(ft, max(_LANE, ((f // 2) // _LANE) * _LANE))  # >=2 grid programs

    mean_f = running_mean.astype(jnp.float32).reshape(1, f)
    var_f = running_var.astype(jnp.float32).reshape(1, f)

    if training:
        if fold > 1:
            mean_row = jnp.tile(mean_f, (1, fold))
            var_row = jnp.tile(var_f, (1, fold))
        else:
            mean_row, var_row = mean_f, var_f
        count1 = jnp.asarray(count, jnp.int32).reshape(1)

        def fused_bytes(ftile):
            return n2 * ftile * (4 * isz + 12) + 32 * ftile * 4

        use_fused = (not force_two_pass) and fused_bytes(ft) <= budget
        if ((not use_fused) and (not force_two_pass)
                and fold == 1 and f % _LANE == 0 and ft > _LANE):
            # shrink the feature tile to keep the cheaper fused single pass
            ft_try = max(_LANE,
                         ((budget // max(n2 * (4 * isz + 12), 1)) // _LANE) * _LANE)
            if fused_bytes(ft_try) <= budget:
                ft = ft_try
                use_fused = True

        if use_fused:
            blk_spec = pl.BlockSpec((n2, ft), lambda j, cnt: (0, j))
            row_spec = pl.BlockSpec((1, ft), lambda j, cnt: (0, j))
            grid_spec = pltpu.PrefetchScalarGridSpec(
                num_scalar_prefetch=1,
                grid=(pl.cdiv(w_row, ft),),
                in_specs=[blk_spec, row_spec, row_spec],
                out_specs=(blk_spec, row_spec, row_spec),
            )
            kernel = functools.partial(_train_kernel, eps=eps, n_batch=n,
                                       fold=fold, f_per_fold=f)
            y2, nm2, nv2 = pl.pallas_call(
                kernel,
                grid_spec=grid_spec,
                out_shape=(
                    jax.ShapeDtypeStruct((n2, w_row), x.dtype),
                    jax.ShapeDtypeStruct((1, w_row), jnp.float32),
                    jax.ShapeDtypeStruct((1, w_row), jnp.float32),
                ),
                compiler_params=pltpu.CompilerParams(
                    dimension_semantics=("parallel",),
                    vmem_limit_bytes=_vmem_limit(fused_bytes(ft), ceiling),
                ),
            )(count1, x2, mean_row, var_row)
            y = y2.reshape(n, f) if fold > 1 else y2
        else:
            # ---- pass 1: batch-tiled streaming stats + running update ------
            bt = _pick_batch_tile(n2, ft * (2 * isz + 8), budget, batch_tile)
            x_spec = pl.BlockSpec((bt, ft), lambda j, i, cnt: (i, j))
            row_spec = pl.BlockSpec((1, ft), lambda j, i, cnt: (0, j))
            grid_spec = pltpu.PrefetchScalarGridSpec(
                num_scalar_prefetch=1,
                grid=(pl.cdiv(w_row, ft), pl.cdiv(n2, bt)),
                in_specs=[x_spec, row_spec, row_spec],
                out_specs=(row_spec, row_spec),
                scratch_shapes=[pltpu.VMEM((1, ft), jnp.float32),
                                pltpu.VMEM((1, ft), jnp.float32)],
            )
            kernel = functools.partial(_stats_kernel, n_batch=n, n_rows=n2,
                                       bt_rows=bt, fold=fold, f_per_fold=f)
            stats_bytes = bt * ft * (2 * isz + 8) + 32 * ft * 4
            nm2, nv2 = pl.pallas_call(
                kernel,
                grid_spec=grid_spec,
                out_shape=(
                    jax.ShapeDtypeStruct((1, w_row), jnp.float32),
                    jax.ShapeDtypeStruct((1, w_row), jnp.float32),
                ),
                compiler_params=pltpu.CompilerParams(
                    dimension_semantics=("parallel", "arbitrary"),
                    vmem_limit_bytes=_vmem_limit(stats_bytes, ceiling),
                ),
            )(count1, x2, mean_row, var_row)

            # ---- pass 2: normalize with the UPDATED statistics --------------
            nm_full = nm2[:, :f]
            nv_full = nv2[:, :f]
            scale_full = lax.rsqrt(nv_full + jnp.float32(eps))
            shift_full = -nm_full * scale_full
            if fold > 1:
                scale_row = jnp.tile(scale_full, (1, fold))
                shift_row = jnp.tile(shift_full, (1, fold))
            else:
                scale_row, shift_row = scale_full, shift_full
            bn = _pick_batch_tile(n2, ft * (4 * isz + 4), budget, batch_tile)
            norm_bytes = bn * ft * (4 * isz + 4) + 16 * ft * 4
            y2 = _normalize_call(x2, scale_row, shift_row, ft, bn,
                                 _vmem_limit(norm_bytes, ceiling), x.dtype)
            y = y2.reshape(n, f) if fold > 1 else y2

        new_mean = nm2[0, :f]
        new_var = nv2[0, :f]
        new_count = jnp.asarray(count, jnp.int32).reshape(()) + jnp.int32(n)
        return y, new_mean, new_var, new_count

    # ---- eval: scale/shift precomputed once, pure elementwise kernel -------
    scale_f = lax.rsqrt(var_f + jnp.float32(eps))
    shift_f = -mean_f * scale_f
    if fold > 1:
        scale_row = jnp.tile(scale_f, (1, fold))
        shift_row = jnp.tile(shift_f, (1, fold))
    else:
        scale_row, shift_row = scale_f, shift_f
    bn = _pick_batch_tile(n2, ft * (4 * isz + 4), budget, batch_tile)
    norm_bytes = bn * ft * (4 * isz + 4) + 16 * ft * 4
    y2 = _normalize_call(x2, scale_row, shift_row, ft, bn,
                         _vmem_limit(norm_bytes, ceiling), x.dtype)
    return y2.reshape(n, f) if fold > 1 else y2


# --------------------------------------------------------------------------
# Pure-JAX reference (mirrors the PyTorch module exactly)
# --------------------------------------------------------------------------
def _reference_forward(x, running_mean, running_var, count, eps, training):
    x = x.astype(jnp.float32)
    if training:
        batch_mean = jnp.mean(x, axis=0)
        batch_var = jnp.var(x, axis=0)           # unbiased=False
        batch_count = x.shape[0]
        delta = batch_mean - running_mean
        tot = count + batch_count
        running_mean = running_mean + delta * batch_count / tot
        running_var = running_var * count
        running_var = running_var + batch_var * batch_count
        running_var = running_var + jnp.square(delta) * count * batch_count / tot
        running_var = running_var / tot
        count = count + batch_count
    y = (x - running_mean) / jnp.sqrt(running_var + eps)
    return y, running_mean, running_var, count


# --------------------------------------------------------------------------
if __name__ == "__main__":
    key = jax.random.PRNGKey(0)
    k0, kb, kc, kd = jax.random.split(key, 4)
    eps = 1e-5

    # ---- primary demo: batch=8, num_features=32 (lane-folded path) ---------
    N, F = 8, 32
    x = jax.random.normal(k0, (N, F), dtype=jnp.float32) * 3.0 + 1.5
    running_mean = jnp.zeros((F,), jnp.float32)
    running_var = jnp.ones((F,), jnp.float32)
    count = jnp.zeros((), jnp.int32)

    y, nm, nv, nc = running_norm_forward(
        x, running_mean, running_var, count, eps=eps, training=True)
    jax.block_until_ready((y, nm, nv, nc))
    y_ref, m_ref, v_ref, c_ref = _reference_forward(
        x, running_mean, running_var, jnp.float32(0.0), eps, True)
    assert jnp.allclose(y, y_ref, atol=1e-4, rtol=1e-4)
    assert jnp.allclose(nm, m_ref, atol=1e-5, rtol=1e-5)
    assert jnp.allclose(nv, v_ref, atol=1e-5, rtol=1e-5)
    assert int(nc) == int(c_ref)

    y_eval = running_norm_forward(x, nm, nv, nc, eps=eps, training=False)
    jax.block_until_ready(y_eval)
    y_eval_ref, _, _, _ = _reference_forward(x, nm, nv, nc.astype(jnp.float32),
                                             eps, False)
    assert jnp.allclose(y_eval, y_eval_ref, atol=1e-4, rtol=1e-4)

    # ---- ragged-feature path (no pad/slice): batch=6, num_features=48 ------
    xb = jax.random.normal(kb, (6, 48), dtype=jnp.float32) * 2.0 - 0.7
    mb = jnp.linspace(-1.0, 1.0, 48, dtype=jnp.float32)
    vb = jnp.linspace(0.5, 2.0, 48, dtype=jnp.float32)
    cb = jnp.asarray(5, jnp.int32)
    yb, nmb, nvb, ncb = running_norm_forward(xb, mb, vb, cb, eps=eps, training=True)
    jax.block_until_ready((yb, nmb, nvb, ncb))
    yb_ref, mb_ref, vb_ref, cb_ref = _reference_forward(
        xb, mb, vb, jnp.float32(5.0), eps, True)
    assert jnp.allclose(yb, yb_ref, atol=1e-4, rtol=1e-4)
    assert jnp.allclose(nmb, mb_ref, atol=1e-5, rtol=1e-5)
    assert jnp.allclose(nvb, vb_ref, atol=1e-5, rtol=1e-5)
    assert int(ncb) == int(cb_ref)

    # ---- gridded feature-tiled fused path: batch=16, F=256, tile=128 -------
    xc = jax.random.normal(kc, (16, 256), dtype=jnp.float32) + 0.3
    mc = jnp.zeros((256,), jnp.float32)
    vc = jnp.ones((256,), jnp.float32)
    cc = jnp.zeros((), jnp.int32)
    yc, nmc, nvc, ncc = running_norm_forward(
        xc, mc, vc, cc, eps=eps, training=True, feature_tile=128)
    jax.block_until_ready((yc, nmc, nvc, ncc))
    yc_ref, mc_ref, vc_ref, cc_ref = _reference_forward(
        xc, mc, vc, jnp.float32(0.0), eps, True)
    assert jnp.allclose(yc, yc_ref, atol=1e-4, rtol=1e-4)
    assert jnp.allclose(nmc, mc_ref, atol=1e-5, rtol=1e-5)
    assert jnp.allclose(nvc, vc_ref, atol=1e-5, rtol=1e-5)
    assert int(ncc) == int(cc_ref)

    yc_eval = running_norm_forward(xc, nmc, nvc, ncc, eps=eps, training=False,
                                   feature_tile=128)
    jax.block_until_ready(yc_eval)
    yc_eval_ref, _, _, _ = _reference_forward(
        xc, nmc, nvc, ncc.astype(jnp.float32), eps, False)
    assert jnp.allclose(yc_eval, yc_eval_ref, atol=1e-4, rtol=1e-4)

    # ---- two-pass batch-tiled training path (ragged last batch tile) -------
    xd = jax.random.normal(kd, (28, 256), dtype=jnp.float32) * 1.3 + 0.4
    md = jnp.full((256,), 0.2, jnp.float32)
    vd = jnp.full((256,), 1.5, jnp.float32)
    cd = jnp.asarray(10, jnp.int32)
    yd, nmd, nvd, ncd = running_norm_forward(
        xd, md, vd, cd, eps=eps, training=True, feature_tile=128,
        batch_tile=8, force_two_pass=True)
    jax.block_until_ready((yd, nmd, nvd, ncd))
    yd_ref, md_ref, vd_ref, cd_ref = _reference_forward(
        xd, md, vd, jnp.float32(10.0), eps, True)
    assert jnp.allclose(yd, yd_ref, atol=1e-4, rtol=1e-4)
    assert jnp.allclose(nmd, md_ref, atol=1e-5, rtol=1e-5)
    assert jnp.allclose(nvd, vd_ref, atol=1e-4, rtol=1e-4)
    assert int(ncd) == int(cd_ref)

    yd_eval = running_norm_forward(xd, nmd, nvd, ncd, eps=eps, training=False,
                                   feature_tile=128, batch_tile=8)
    jax.block_until_ready(yd_eval)
    yd_eval_ref, _, _, _ = _reference_forward(
        xd, nmd, nvd, ncd.astype(jnp.float32), eps, False)
    assert jnp.allclose(yd_eval, yd_eval_ref, atol=1e-4, rtol=1e-4)

    print("KERNEL_OK")
</pallas_src>

<mosaic_0001>
module attributes {stable_mosaic.version = 11 : i64} {
  func.func @_train_kernel(%arg0: i32, %arg1: memref<1xi32, #tpu.memory_space<smem>>, %arg2: memref<2x128xf32, #tpu.memory_space<vmem>>, %arg3: memref<1x128xf32, #tpu.memory_space<vmem>>, %arg4: memref<1x128xf32, #tpu.memory_space<vmem>>, %arg5: memref<2x128xf32, #tpu.memory_space<vmem>>, %arg6: memref<1x128xf32, #tpu.memory_space<vmem>>, %arg7: memref<1x128xf32, #tpu.memory_space<vmem>>) attributes {dimension_semantics = [#tpu.dimension_semantics<parallel>], iteration_bounds = array<i64: 1>, scalar_prefetch = 1 : i64, scratch_operands = 0 : i64, tpu.core_type = #tpu.core_type<tc>, window_params = [{transform_indices = @transform_0, window_bounds = array<i64: 2, 128>}, {transform_indices = @transform_1, window_bounds = array<i64: 1, 128>}, {transform_indices = @transform_2, window_bounds = array<i64: 1, 128>}, {transform_indices = @transform_3, window_bounds = array<i64: 2, 128>}, {transform_indices = @transform_4, window_bounds = array<i64: 1, 128>}, {transform_indices = @transform_5, window_bounds = array<i64: 1, 128>}]} {
    %c0 = arith.constant 0 : index
    %c0_0 = arith.constant 0 : index
    %0 = vector.load %arg2[%c0, %c0_0] : memref<2x128xf32, #tpu.memory_space<vmem>>, vector<2x128xf32>
    %cst = arith.constant dense<0.000000e+00> : vector<128xf32>
    %1 = vector.multi_reduction <add>, %0, %cst [0] : vector<2x128xf32> to vector<128xf32>
    %2 = vector.shape_cast %1 : vector<128xf32> to vector<1x128xf32>
    %c32_i32 = arith.constant 32 : i32
    %3 = tpu.dynamic_rotate %2 by %c32_i32 dim 1 : vector<1x128xf32>, i32 -> vector<1x128xf32>
    %4 = arith.addf %2, %3 : vector<1x128xf32>
    %c64_i32 = arith.constant 64 : i32
    %5 = tpu.dynamic_rotate %4 by %c64_i32 dim 1 : vector<1x128xf32>, i32 -> vector<1x128xf32>
    %6 = arith.addf %4, %5 : vector<1x128xf32>
    %cst_1 = arith.constant 1.250000e-01 : f32
    %7 = vector.broadcast %cst_1 : f32 to vector<1x128xf32>
    %8 = arith.mulf %6, %7 : vector<1x128xf32>
    %9 = vector.broadcast %8 : vector<1x128xf32> to vector<2x128xf32>
    %10 = arith.subf %0, %9 : vector<2x128xf32>
    %11 = arith.mulf %10, %10 : vector<2x128xf32>
    %cst_2 = arith.constant dense<0.000000e+00> : vector<128xf32>
    %12 = vector.multi_reduction <add>, %11, %cst_2 [0] : vector<2x128xf32> to vector<128xf32>
    %13 = vector.shape_cast %12 : vector<128xf32> to vector<1x128xf32>
    %c32_i32_3 = arith.constant 32 : i32
    %14 = tpu.dynamic_rotate %13 by %c32_i32_3 dim 1 : vector<1x128xf32>, i32 -> vector<1x128xf32>
    %15 = arith.addf %13, %14 : vector<1x128xf32>
    %c64_i32_4 = arith.constant 64 : i32
    %16 = tpu.dynamic_rotate %15 by %c64_i32_4 dim 1 : vector<1x128xf32>, i32 -> vector<1x128xf32>
    %17 = arith.addf %15, %16 : vector<1x128xf32>
    %cst_5 = arith.constant 1.250000e-01 : f32
    %18 = vector.broadcast %cst_5 : f32 to vector<1x128xf32>
    %19 = arith.mulf %17, %18 : vector<1x128xf32>
    %c0_6 = arith.constant 0 : index
    %20 = memref.load %arg1[%c0_6] : memref<1xi32, #tpu.memory_space<smem>>
    %21 = arith.sitofp %20 : i32 to f32
    %c0_7 = arith.constant 0 : index
    %c0_8 = arith.constant 0 : index
    %22 = vector.load %arg3[%c0_7, %c0_8] : memref<1x128xf32, #tpu.memory_space<vmem>>, vector<1x128xf32>
    %c0_9 = arith.constant 0 : index
    %c0_10 = arith.constant 0 : index
    %23 = vector.load %arg4[%c0_9, %c0_10] : memref<1x128xf32, #tpu.memory_space<vmem>>, vector<1x128xf32>
    %cst_11 = arith.constant 8.000000e+00 : f32
    %24 = arith.addf %21, %cst_11 : f32
    %25 = arith.subf %8, %22 : vector<1x128xf32>
    %cst_12 = arith.constant 8.000000e+00 : f32
    %26 = arith.divf %cst_12, %24 : f32
    %27 = vector.broadcast %26 : f32 to vector<1x128xf32>
    %28 = arith.mulf %25, %27 : vector<1x128xf32>
    %29 = arith.addf %22, %28 : vector<1x128xf32>
    %30 = vector.broadcast %21 : f32 to vector<1x128xf32>
    %31 = arith.mulf %23, %30 : vector<1x128xf32>
    %cst_13 = arith.constant 8.000000e+00 : f32
    %32 = vector.broadcast %cst_13 : f32 to vector<1x128xf32>
    %33 = arith.mulf %19, %32 : vector<1x128xf32>
    %34 = arith.addf %31, %33 : vector<1x128xf32>
    %35 = arith.mulf %25, %25 : vector<1x128xf32>
    %cst_14 = arith.constant 8.000000e+00 : f32
    %36 = arith.mulf %21, %cst_14 : f32
    %37 = arith.divf %36, %24 : f32
    %38 = vector.broadcast %37 : f32 to vector<1x128xf32>
    %39 = arith.mulf %35, %38 : vector<1x128xf32>
    %40 = arith.addf %34, %39 : vector<1x128xf32>
    %41 = vector.broadcast %24 : f32 to vector<1x128xf32>
    %42 = arith.divf %40, %41 : vector<1x128xf32>
    %c0_15 = arith.constant 0 : index
    %c0_16 = arith.constant 0 : index
    %43 = vector.load %arg6[%c0_15, %c0_16] : memref<1x128xf32, #tpu.memory_space<vmem>>, vector<1x128xf32>
    tpu.vector_store %arg6[%c0_15, %c0_16], %29 {strides = array<i32>} : memref<1x128xf32, #tpu.memory_space<vmem>>, vector<1x128xf32>,
    %c0_17 = arith.constant 0 : index
    %c0_18 = arith.constant 0 : index
    %44 = vector.load %arg7[%c0_17, %c0_18] : memref<1x128xf32, #tpu.memory_space<vmem>>, vector<1x128xf32>
    tpu.vector_store %arg7[%c0_17, %c0_18], %42 {strides = array<i32>} : memref<1x128xf32, #tpu.memory_space<vmem>>, vector<1x128xf32>,
    %cst_19 = arith.constant 9.99999974E-6 : f32
    %45 = vector.broadcast %cst_19 : f32 to vector<1x128xf32>
    %46 = arith.addf %42, %45 : vector<1x128xf32>
    %47 = math.rsqrt %46 : vector<1x128xf32>
    %cst_20 = arith.constant 0.000000e+00 : f32
    %48 = vector.broadcast %cst_20 : f32 to vector<1x128xf32>
    %49 = arith.subf %48, %29 : vector<1x128xf32>
    %50 = arith.mulf %49, %47 : vector<1x128xf32>
    %c0_21 = arith.constant 0 : index
    %c0_22 = arith.constant 0 : index
    %51 = vector.load %arg2[%c0_21, %c0_22] : memref<2x128xf32, #tpu.memory_space<vmem>>, vector<2x128xf32>
    %52 = vector.broadcast %47 : vector<1x128xf32> to vector<2x128xf32>
    %53 = arith.mulf %51, %52 : vector<2x128xf32>
    %54 = vector.broadcast %50 : vector<1x128xf32> to vector<2x128xf32>
    %55 = arith.addf %53, %54 : vector<2x128xf32>
    %c0_23 = arith.constant 0 : index
    %c0_24 = arith.constant 0 : index
    %56 = vector.load %arg5[%c0_23, %c0_24] : memref<2x128xf32, #tpu.memory_space<vmem>>, vector<2x128xf32>
    tpu.vector_store %arg5[%c0_23, %c0_24], %55 {strides = array<i32>} : memref<2x128xf32, #tpu.memory_space<vmem>>, vector<2x128xf32>,
    return
  }
  func.func @transform_0(%arg0: i32, %arg1: memref<1xi32, #tpu.memory_space<smem>>) -> (i32, i32) {
    %c0_i32 = arith.constant 0 : i32
    %c0_i32_0 = arith.constant 0 : i32
    return %c0_i32, %arg0 : i32, i32
  }
  func.func @transform_1(%arg0: i32, %arg1: memref<1xi32, #tpu.memory_space<smem>>) -> (i32, i32) {
    %c0_i32 = arith.constant 0 : i32
    %c0_i32_0 = arith.constant 0 : i32
    return %c0_i32, %arg0 : i32, i32
  }
  func.func @transform_2(%arg0: i32, %arg1: memref<1xi32, #tpu.memory_space<smem>>) -> (i32, i32) {
    %c0_i32 = arith.constant 0 : i32
    %c0_i32_0 = arith.constant 0 : i32
    return %c0_i32, %arg0 : i32, i32
  }
  func.func @transform_3(%arg0: i32, %arg1: memref<1xi32, #tpu.memory_space<smem>>) -> (i32, i32) {
    %c0_i32 = arith.constant 0 : i32
    %c0_i32_0 = arith.constant 0 : i32
    return %c0_i32, %arg0 : i32, i32
  }
  func.func @transform_4(%arg0: i32, %arg1: memref<1xi32, #tpu.memory_space<smem>>) -> (i32, i32) {
    %c0_i32 = arith.constant 0 : i32
    %c0_i32_0 = arith.constant 0 : i32
    return %c0_i32, %arg0 : i32, i32
  }
  func.func @transform_5(%arg0: i32, %arg1: memref<1xi32, #tpu.memory_space<smem>>) -> (i32, i32) {
    %c0_i32 = arith.constant 0 : i32
    %c0_i32_0 = arith.constant 0 : i32
    return %c0_i32, %arg0 : i32, i32
  }
}

</mosaic_0001>

<llo_original>
// kernel: tpu_custom_call.1
$region0: #{tpu_custom_call.1}
  #allocation0 [shape = 'u32[]', space=smem, size = 0x4, offset = 0x4, fixed_abs, tag = 'smem constant byte address 0x4 - core index']
  #allocation1 [shape = 'u32[144,128]{1,0:T(1,128)}', space=vmem, size = 0x12000, scoped, tag = 'internal scratch']
  #allocation2 [shape = 's32[1]{0}', space=sflag, size = 0x4, scoped, tag = 'scoped memory for tpu_custom_call.1']
  #allocation3 [shape = 's32[1]{0:T(128)S(6)}', space=smem, size = 0x200, scoped, tag = 'prefetched SMEM operand 0']
  %s0 = inlined_call_operand.<no memory space> [shape: s32[1], index: 0, kind: input, shape index: {}]
  %s1 = inlined_call_operand.vmem [shape: f32[2,128], index: 1, kind: input, shape index: {}]
  %s2 = inlined_call_operand.vmem [shape: f32[1,128], index: 2, kind: input, shape index: {}]
  %s3 = inlined_call_operand.vmem [shape: f32[1,128], index: 3, kind: input, shape index: {}]
  %s4 = inlined_call_operand.hbm [shape: f32[2,128], index: 4, kind: output, shape index: {0}]
  %s5 = inlined_call_operand.hbm [shape: f32[1,128], index: 5, kind: output, shape index: {1}]
  %s6 = inlined_call_operand.hbm [shape: f32[1,128], index: 6, kind: output, shape index: {2}]
  %7 = xla_tuple %s4, %s5, %s6
  %s8 = sld [smem:[#allocation0]]
  $region38: #{tpu_custom_call.1} parent=0
    _
  %s10 = ssub.s32 1, %s8
  %s11 = scalar_select 0, %s10, %s8
  %12 = sst [smem:[#allocation3]] %s0
  $region1: #{tpu_custom_call.1} parent=0
    #allocation4 [shape = 'u8[1024]{0}', space=vmem, size = 0x400, scoped, tag = 'output window, operand 0, single buffered']
    #allocation5 [shape = 's32[1]{0}', space=sflag, size = 0x4, scoped, tag = 'scoped memory for tpu_custom_call.1']
    #allocation6 [shape = 'u8[512]{0}', space=vmem, size = 0x400, scoped, tag = 'output window, operand 1, single buffered']
    #allocation7 [shape = 's32[1]{0}', space=sflag, size = 0x4, scoped, tag = 'scoped memory for tpu_custom_call.1']
    #allocation8 [shape = 'u8[512]{0}', space=vmem, size = 0x400, scoped, tag = 'output window, operand 2, single buffered']
    %13 = vsyncpa [#allocation5], 0
    %14 = vsyncpa [#allocation7], 0
    // Predicated region
    $region2: #{tpu_custom_call.1} parent=1 // pred_check
      _
    $region3: #{tpu_custom_call.1} parent=1 // pred_check_branch
      %16 = sbr.rel (0) target = $region5
    $region4: #{tpu_custom_call.1} parent=1 // pred_region
      _
    $region5: #{tpu_custom_call.1} parent=1 // pred_fallthru
      _
    // Predicated region
    $region6: #{tpu_custom_call.1} parent=1 // pred_check
      _
    $region7: #{tpu_custom_call.1} parent=1 // pred_check_branch
      %18 = sbr.rel (0) target = $region9
    $region8: #{tpu_custom_call.1} parent=1 // pred_region
      _
    $region9: #{tpu_custom_call.1} parent=1 // pred_fallthru
      _
    // Predicated region
    $region10: #{tpu_custom_call.1} parent=1 // pred_check
      _
    $region11: #{tpu_custom_call.1} parent=1 // pred_check_branch
      %20 = sbr.rel (0) target = $region13
    $region12: #{tpu_custom_call.1} parent=1 // pred_region
      _
    $region13: #{tpu_custom_call.1} parent=1 // pred_fallthru
      _
    %v21 = vld [vmem:[%s1] sm:$0x3]
    %vm22 = vcmask 1041408
    %v23 = vsel %vm22, %v21, 0.0
    %v24 = vrot.slane %v23, 4
    %v25 = vadd.f32 %v23, %v24
    %v26 = vrot.slane %v25, 2
    %v27 = vadd.f32 %v25, %v26
    %v28 = vrot.slane %v27, 1
    %v29 = vadd.f32 %v27, %v28
    %30 = vrot.lane.b32.xlu0 %v29, 32
    %v31 = vpop.permute.xlu0 %30
    %v32 = vadd.f32 %v29, %v31
    %33 = vrot.lane.b32.xlu0 %v32, 64
    %v34 = vpop.permute.xlu0 %33
    %v35 = vadd.f32 %v32, %v34
    %v36 = vmul.f32 %v35, 0.125
    %v37 = vlaneseq
    %v38 = vshrl.u32 %v37, 7
    %v39 = vsub.s32 0, %v38
    %v40 = vrot.slane %v36, %v39
    %v41 = vsub.f32 %v21, %v40
    %v42 = vmul.f32 %v41, %v41
    %v43 = vsel %vm22, %v42, 0.0
    %v44 = vrot.slane %v43, 4
    %v45 = vadd.f32 %v43, %v44
    %v46 = vrot.slane %v45, 2
    %v47 = vadd.f32 %v45, %v46
    %v48 = vrot.slane %v47, 1
    %v49 = vadd.f32 %v47, %v48
    %50 = vrot.lane.b32.xlu0 %v49, 32
    %v51 = vpop.permute.xlu0 %50
    %v52 = vadd.f32 %v49, %v51
    %53 = vrot.lane.b32.xlu0 %v52, 64
    %v54 = vpop.permute.xlu0 %53
    %v55 = vadd.f32 %v52, %v54
    %v56 = vmul.f32 %v55, 0.125
    %s57 = sld [smem:[#allocation3]]
    %s58 = scvt.s32.f32 %s57
    %v59 = vld [vmem:[%s2] sm:$0x1]
    %v60 = vld [vmem:[%s3] sm:$0x1]
    %s61 = sadd.f32 %s58, 8.0
    %v62 = vsub.f32 %v36, %v59
    %v63 = vstv %s61
    %v64 = vrcp.pop %v63
    %s65 = vtos %v64
    %s66 = smul.f32 8.0, %s65
    %v67 = vstv %s66
    %v68 = vmul.f32 %v62, %v67
    %v69 = vadd.f32 %v59, %v68
    %v70 = vstv %s58
    %v71 = vmul.f32 %v60, %v70
    %v72 = vmul.f32 %v56, 8.0
    %v73 = vadd.f32 %v71, %v72
    %v74 = vmul.f32 %v62, %v62
    %s75 = smul.f32 %s58, 8.0
    %v76 = vstv %s61
    %v77 = vrcp.pop %v76
    %s78 = vtos %v77
    %s79 = smul.f32 %s75, %s78
    %v80 = vstv %s79
    %v81 = vmul.f32 %v74, %v80
    %v82 = vadd.f32 %v73, %v81
    %v83 = vstv %s61
    %v84 = vrcp.pop %v83
    %v85 = vmul.f32 %v82, %v84
    %86 = vst [vmem:[#allocation6] sm:$0x1] %v69
    %87 = vst [vmem:[#allocation8] sm:$0x1] %v85
    %v88 = vadd.f32 %v85, 1e-05
    %v89 = vrsqrt.pop %v88
    %v90 = vsub.f32 0.0, %v69
    %v91 = vmul.f32 %v90, %v89
    %v92 = vld [vmem:[%s1] sm:$0x3]
    %v94 = vlaneseq
    %v95 = vshrl.u32 %v94, 7
    %v96 = vsub.s32 0, %v95
    %v97 = vrot.slane %v89, %v96
    %v99 = vmul.f32 %v92, %v97
    %v101 = vlaneseq
    %v102 = vshrl.u32 %v101, 7
    %v103 = vsub.s32 0, %v102
    %v104 = vrot.slane %v91, %v103
    %v106 = vadd.f32 %v99, %v104
    %107 = vst [vmem:[#allocation4] sm:$0x3] %v106
    // Predicated region
    $region14: #{tpu_custom_call.1} parent=1 // pred_check
      _
    $region15: #{tpu_custom_call.1} parent=1 // pred_check_branch
      %109 = sbr.rel (0) target = $region17
    $region16: #{tpu_custom_call.1} parent=1 // pred_region
      %s111 = ssub.s32 32, 32
      %112 = vsyncadd [#allocation5], %s111
      %s114 = sshll.u32 [#allocation4], 4
      %s115 = int_to_ptr.vmem [resolvable:$true] %s114
      %117 = dma.vmem_to_hbm [thread:$0]  %s115, 32, %s4, [#allocation5]
    $region17: #{tpu_custom_call.1} parent=1 // pred_fallthru
      _
    // Predicated region
    $region18: #{tpu_custom_call.1} parent=1 // pred_check
      _
    $region19: #{tpu_custom_call.1} parent=1 // pred_check_branch
      %119 = sbr.rel (0) target = $region21
    $region20: #{tpu_custom_call.1} parent=1 // pred_region
      %s121 = ssub.s32 16, 16
      %122 = vsyncadd [#allocation7], %s121
      %s124 = sshll.u32 [#allocation6], 4
      %s125 = int_to_ptr.vmem [resolvable:$true] %s124
      %127 = dma.vmem_to_hbm [thread:$0]  %s125, 16, %s5, [#allocation7]
    $region21: #{tpu_custom_call.1} parent=1 // pred_fallthru
      _
    // Predicated region
    $region22: #{tpu_custom_call.1} parent=1 // pred_check
      _
    $region23: #{tpu_custom_call.1} parent=1 // pred_check_branch
      %129 = sbr.rel (0) target = $region25
    $region24: #{tpu_custom_call.1} parent=1 // pred_region
      %s131 = ssub.s32 16, 16
      %132 = vsyncadd [#allocation7], %s131
      %s134 = sshll.u32 [#allocation8], 4
      %s135 = int_to_ptr.vmem [resolvable:$true] %s134
      %137 = dma.vmem_to_hbm [thread:$0]  %s135, 16, %s6, [#allocation7]
    $region25: #{tpu_custom_call.1} parent=1 // pred_fallthru
      _
    // Predicated region
    $region26: #{tpu_custom_call.1} parent=1 // pred_check
      _
    $region27: #{tpu_custom_call.1} parent=1 // pred_check_branch
      %139 = sbr.rel (0) target = $region29
    $region28: #{tpu_custom_call.1} parent=1 // pred_region
      %140 = dma.done [#allocation5], 32
    $region29: #{tpu_custom_call.1} parent=1 // pred_fallthru
      _
    // Predicated region
    $region30: #{tpu_custom_call.1} parent=1 // pred_check
      _
    $region31: #{tpu_custom_call.1} parent=1 // pred_check_branch
      %142 = sbr.rel (0) target = $region33
    $region32: #{tpu_custom_call.1} parent=1 // pred_region
      %143 = dma.done [#allocation7], 16
    $region33: #{tpu_custom_call.1} parent=1 // pred_fallthru
      _
    // Predicated region
    $region34: #{tpu_custom_call.1} parent=1 // pred_check
      _
    $region35: #{tpu_custom_call.1} parent=1 // pred_check_branch
      %145 = sbr.rel (0) target = $region37
    $region36: #{tpu_custom_call.1} parent=1 // pred_region
      %146 = dma.done [#allocation7], 16
    $region37: #{tpu_custom_call.1} parent=1 // pred_fallthru
      _
    %147 = vsyncpa [#allocation5], 1
    %148 = vsyncpa [#allocation7], 1

</llo_original>
